<compile_context>
chip_gen: v7x
topology: tpu7x:2x2x1
jax: 0.10.0
libtpu: 0.0.40
codegen_flags: <defaults>
</compile_context>

<pallas_src>
import functools

import jax
import jax.numpy as jnp
from jax.experimental import pallas as pl
from jax.experimental.pallas import tpu as pltpu


def _round_up(x, m):
    return ((x + m - 1) // m) * m


def mlp_kernel(x_ref, w1_ref, b1_ref, w2_ref, b2_ref, o_ref):
    n_out = o_ref.shape[-1]                      # true (unpadded) output width

    # fc1: cast x to bf16 in-kernel (no padded HBM copy), f32 accumulate, bias+ReLU.
    x = x_ref[...].astype(w1_ref.dtype)
    h = jnp.dot(x, w1_ref[...], preferred_element_type=jnp.float32)
    h = jnp.maximum(h + b1_ref[...], 0.0)

    # fc2 on the lane-dense (128-wide) padded weight; padded lanes get -1e30 bias.
    logits = jnp.dot(h.astype(w2_ref.dtype), w2_ref[...],
                     preferred_element_type=jnp.float32)
    logits = logits + b2_ref[...]

    # Numerically stable softmax over the lane axis; exact division so rows sum to 1.
    m = jnp.max(logits, axis=1, keepdims=True)
    e = jnp.exp(logits - m)                      # padded lanes -> exp(-1e30 - m) == 0
    denom = jnp.sum(e, axis=1, keepdims=True)
    probs = e / denom

    # Narrow store: only the real n_output lanes go back to HBM.
    o_ref[...] = probs[:, :n_out].astype(o_ref.dtype)


@functools.partial(jax.jit, static_argnames=("block_b",))
def mlp_forward(x, w1, b1, w2, b2, *, block_b=2048):
    """x: (B, input_len) f32; w1: (input_len, 128); b1: (1,128) or (128,);
    w2: (128, n_output); b2: (1, n_output) or (n_output,).
    Returns (B, n_output) f32 softmax probabilities."""
    B, K = x.shape
    hidden = w1.shape[1]
    n_output = w2.shape[1]
    mm_dtype = jnp.bfloat16

    # Lane-dense padded width for the second matmul / softmax (store stays narrow).
    N_pad = _round_up(max(n_output, 128), 128)

    # Batch tile: multiple of 8 sublanes, capped so double-buffered x tiles plus
    # ~6 live f32 (TB, 128) intermediates stay well inside v7x's 64 MiB VMEM.
    bytes_per_row = K * 4 * 2 + hidden * 4 * 6
    tb_cap = max(8, ((24 << 20) // bytes_per_row) // 8 * 8)
    TB = max(8, min(block_b, _round_up(B, 8), tb_cap))
    grid = (pl.cdiv(B, TB),)                     # ragged last tile handled by masking

    # Tiny, one-time weight prep (no copy of x).
    w1_c = w1.astype(mm_dtype)
    b1_c = b1.reshape(1, hidden).astype(jnp.float32)
    w2_p = jnp.zeros((hidden, N_pad), mm_dtype).at[:, :n_output].set(w2.astype(mm_dtype))
    # Padded output lanes get a huge negative bias so softmax assigns them exactly 0.
    b2_p = jnp.full((1, N_pad), -1e30, jnp.float32).at[0, :n_output].set(
        b2.reshape(-1).astype(jnp.float32))

    return pl.pallas_call(
        mlp_kernel,
        out_shape=jax.ShapeDtypeStruct((B, n_output), jnp.float32),
        grid=grid,
        in_specs=[
            pl.BlockSpec((TB, K), lambda i: (i, 0)),          # x tile (pipelined, f32)
            pl.BlockSpec((K, hidden), lambda i: (0, 0)),      # w1 resident
            pl.BlockSpec((1, hidden), lambda i: (0, 0)),      # b1 resident
            pl.BlockSpec((hidden, N_pad), lambda i: (0, 0)),  # w2 resident (padded lanes)
            pl.BlockSpec((1, N_pad), lambda i: (0, 0)),       # b2 resident (padded lanes)
        ],
        out_specs=pl.BlockSpec((TB, n_output), lambda i: (i, 0)),   # narrow output
        compiler_params=pltpu.CompilerParams(
            dimension_semantics=("parallel",),
        ),
    )(x, w1_c, b1_c, w2_p, b2_p)


def init_params(key, input_len, n_output, hidden=128):
    # Deterministic synthetic init (PyTorch-like uniform bound 1/sqrt(fan_in)).
    k1, k2, k3, k4 = jax.random.split(key, 4)
    bound1 = 1.0 / jnp.sqrt(input_len)
    bound2 = 1.0 / jnp.sqrt(hidden)
    w1 = jax.random.uniform(k1, (input_len, hidden), jnp.float32, -bound1, bound1)
    b1 = jax.random.uniform(k2, (1, hidden), jnp.float32, -bound1, bound1)
    w2 = jax.random.uniform(k3, (hidden, n_output), jnp.float32, -bound2, bound2)
    b2 = jax.random.uniform(k4, (1, n_output), jnp.float32, -bound2, bound2)
    return w1, b1, w2, b2


def _reference(x, w1, b1, w2, b2):
    h = jnp.maximum(x @ w1 + b1, 0.0)
    return jax.nn.softmax(h @ w2 + b2, axis=1)


if __name__ == "__main__":
    key = jax.random.PRNGKey(0)
    k_x, k_p, k_x2 = jax.random.split(key, 3)

    # Small-shape check (single grid step).
    batch, input_len, n_output = 8, 32, 8
    x = jax.random.normal(k_x, (batch, input_len), jnp.float32)
    w1, b1, w2, b2 = init_params(k_p, input_len, n_output)

    out = jax.block_until_ready(mlp_forward(x, w1, b1, w2, b2))
    ref = _reference(x, w1, b1, w2, b2)
    assert out.shape == (batch, n_output)
    # bf16 matmul operands -> loosened tolerance vs the f32 reference.
    assert jnp.allclose(out, ref, atol=2e-2), float(jnp.max(jnp.abs(out - ref)))
    # Exact softmax division -> rows sum to 1 within f32 rounding.
    assert jnp.allclose(jnp.sum(out, axis=1), 1.0, atol=1e-4)

    # Larger, non-multiple-of-8 batch exercises the ragged masked last tile.
    batch2 = 1030
    x2 = jax.random.normal(k_x2, (batch2, input_len), jnp.float32)
    out2 = jax.block_until_ready(mlp_forward(x2, w1, b1, w2, b2))
    ref2 = _reference(x2, w1, b1, w2, b2)
    assert out2.shape == (batch2, n_output)
    assert jnp.allclose(out2, ref2, atol=2e-2), float(jnp.max(jnp.abs(out2 - ref2)))
    assert jnp.allclose(jnp.sum(out2, axis=1), 1.0, atol=1e-4)

    print("KERNEL_OK")
</pallas_src>

<mosaic_0001>
module attributes {stable_mosaic.version = 11 : i64} {
  func.func @mlp_kernel(%arg0: i32, %arg1: memref<8x32xf32, #tpu.memory_space<vmem>>, %arg2: memref<32x128xbf16, #tpu.memory_space<vmem>>, %arg3: memref<1x128xf32, #tpu.memory_space<vmem>>, %arg4: memref<128x128xbf16, #tpu.memory_space<vmem>>, %arg5: memref<1x128xf32, #tpu.memory_space<vmem>>, %arg6: memref<8x8xf32, #tpu.memory_space<vmem>>) attributes {dimension_semantics = [#tpu.dimension_semantics<parallel>], iteration_bounds = array<i64: 1>, scalar_prefetch = 0 : i64, scratch_operands = 0 : i64, tpu.core_type = #tpu.core_type<tc>, window_params = [{transform_indices = @transform_0, window_bounds = array<i64: 8, 32>}, {pipeline_mode = #tpu.pipeline_mode<synchronous>, transform_indices = @transform_1, window_bounds = array<i64: 32, 128>}, {pipeline_mode = #tpu.pipeline_mode<synchronous>, transform_indices = @transform_2, window_bounds = array<i64: 1, 128>}, {pipeline_mode = #tpu.pipeline_mode<synchronous>, transform_indices = @transform_3, window_bounds = array<i64: 128, 128>}, {pipeline_mode = #tpu.pipeline_mode<synchronous>, transform_indices = @transform_4, window_bounds = array<i64: 1, 128>}, {transform_indices = @transform_5, window_bounds = array<i64: 8, 8>}]} {
    %c0 = arith.constant 0 : index
    %c0_0 = arith.constant 0 : index
    %0 = vector.load %arg1[%c0, %c0_0] : memref<8x32xf32, #tpu.memory_space<vmem>>, vector<8x32xf32>
    %1 = arith.truncf %0 : vector<8x32xf32> to vector<8x32xbf16>
    %c0_1 = arith.constant 0 : index
    %c0_2 = arith.constant 0 : index
    %2 = vector.load %arg2[%c0_1, %c0_2] : memref<32x128xbf16, #tpu.memory_space<vmem>>, vector<32x128xbf16>
    %cst = arith.constant dense<0.000000e+00> : vector<8x128xf32>
    %3 = tpu.matmul %1, %2, %cst {dimension_numbers = #tpu.dot_dimension_numbers<[1], [0], [0], [1], [0, 0, 1, 1], [], []>} : vector<8x32xbf16>, vector<32x128xbf16>, vector<8x128xf32> -> vector<8x128xf32>
    %c0_3 = arith.constant 0 : index
    %c0_4 = arith.constant 0 : index
    %4 = vector.load %arg3[%c0_3, %c0_4] : memref<1x128xf32, #tpu.memory_space<vmem>>, vector<1x128xf32>
    %5 = vector.broadcast %4 : vector<1x128xf32> to vector<8x128xf32>
    %6 = arith.addf %3, %5 : vector<8x128xf32>
    %cst_5 = arith.constant 0.000000e+00 : f32
    %7 = vector.broadcast %cst_5 : f32 to vector<8x128xf32>
    %8 = arith.maximumf %6, %7 : vector<8x128xf32>
    %9 = arith.truncf %8 : vector<8x128xf32> to vector<8x128xbf16>
    %c0_6 = arith.constant 0 : index
    %c0_7 = arith.constant 0 : index
    %10 = vector.load %arg4[%c0_6, %c0_7] : memref<128x128xbf16, #tpu.memory_space<vmem>>, vector<128x128xbf16>
    %cst_8 = arith.constant dense<0.000000e+00> : vector<8x128xf32>
    %11 = tpu.matmul %9, %10, %cst_8 {dimension_numbers = #tpu.dot_dimension_numbers<[1], [0], [0], [1], [0, 0, 1, 1], [], []>} : vector<8x128xbf16>, vector<128x128xbf16>, vector<8x128xf32> -> vector<8x128xf32>
    %c0_9 = arith.constant 0 : index
    %c0_10 = arith.constant 0 : index
    %12 = vector.load %arg5[%c0_9, %c0_10] : memref<1x128xf32, #tpu.memory_space<vmem>>, vector<1x128xf32>
    %13 = vector.broadcast %12 : vector<1x128xf32> to vector<8x128xf32>
    %14 = arith.addf %11, %13 : vector<8x128xf32>
    %cst_11 = arith.constant dense<0xFF800000> : vector<8xf32>
    %15 = vector.multi_reduction <maximumf>, %14, %cst_11 [1] : vector<8x128xf32> to vector<8xf32>
    %16 = vector.shape_cast %15 : vector<8xf32> to vector<8x1xf32>
    %17 = vector.broadcast %16 : vector<8x1xf32> to vector<8x128xf32>
    %18 = arith.subf %14, %17 : vector<8x128xf32>
    %19 = math.exp %18 : vector<8x128xf32>
    %cst_12 = arith.constant dense<0.000000e+00> : vector<8xf32>
    %20 = vector.multi_reduction <add>, %19, %cst_12 [1] : vector<8x128xf32> to vector<8xf32>
    %21 = vector.shape_cast %20 : vector<8xf32> to vector<8x1xf32>
    %22 = vector.broadcast %21 : vector<8x1xf32> to vector<8x128xf32>
    %23 = arith.divf %19, %22 : vector<8x128xf32>
    %24 = vector.extract_strided_slice %23 {offsets = [0, 0], sizes = [8, 8], strides = [1, 1]} : vector<8x128xf32> to vector<8x8xf32>
    %c0_13 = arith.constant 0 : index
    %c0_14 = arith.constant 0 : index
    %25 = vector.load %arg6[%c0_13, %c0_14] : memref<8x8xf32, #tpu.memory_space<vmem>>, vector<8x8xf32>
    tpu.vector_store %arg6[%c0_13, %c0_14], %24 {strides = array<i32>} : memref<8x8xf32, #tpu.memory_space<vmem>>, vector<8x8xf32>,
    return
  }
  func.func @transform_0(%arg0: i32) -> (i32, i32) {
    %c0_i32 = arith.constant 0 : i32
    %c0_i32_0 = arith.constant 0 : i32
    return %arg0, %c0_i32 : i32, i32
  }
  func.func @transform_1(%arg0: i32) -> (i32, i32) {
    %c0_i32 = arith.constant 0 : i32
    %c0_i32_0 = arith.constant 0 : i32
    %c0_i32_1 = arith.constant 0 : i32
    return %c0_i32, %c0_i32_0 : i32, i32
  }
  func.func @transform_2(%arg0: i32) -> (i32, i32) {
    %c0_i32 = arith.constant 0 : i32
    %c0_i32_0 = arith.constant 0 : i32
    %c0_i32_1 = arith.constant 0 : i32
    return %c0_i32, %c0_i32_0 : i32, i32
  }
  func.func @transform_3(%arg0: i32) -> (i32, i32) {
    %c0_i32 = arith.constant 0 : i32
    %c0_i32_0 = arith.constant 0 : i32
    %c0_i32_1 = arith.constant 0 : i32
    return %c0_i32, %c0_i32_0 : i32, i32
  }
  func.func @transform_4(%arg0: i32) -> (i32, i32) {
    %c0_i32 = arith.constant 0 : i32
    %c0_i32_0 = arith.constant 0 : i32
    %c0_i32_1 = arith.constant 0 : i32
    return %c0_i32, %c0_i32_0 : i32, i32
  }
  func.func @transform_5(%arg0: i32) -> (i32, i32) {
    %c0_i32 = arith.constant 0 : i32
    %c0_i32_0 = arith.constant 0 : i32
    return %arg0, %c0_i32 : i32, i32
  }
}

</mosaic_0001>

<llo_original>
// kernel: mlp_forward.1
$region0: #{mlp_forward.1}
  #allocation0 [shape = 'u32[]', space=smem, size = 0x4, offset = 0x4, fixed_abs, tag = 'smem constant byte address 0x4 - core index']
  #allocation1 [shape = 'u32[144,128]{1,0:T(1,128)}', space=vmem, size = 0x12000, scoped, tag = 'internal scratch']
  %s0 = inlined_call_operand.vmem [shape: f32[8,32], index: 0, kind: input, shape index: {}]
  %s1 = inlined_call_operand.vmem [shape: bf16[32,128], index: 1, kind: input, shape index: {}]
  %s2 = inlined_call_operand.vmem [shape: f32[1,128], index: 2, kind: input, shape index: {}]
  %s3 = inlined_call_operand.vmem [shape: bf16[128,128], index: 3, kind: input, shape index: {}]
  %s4 = inlined_call_operand.vmem [shape: f32[1,128], index: 4, kind: input, shape index: {}]
  %s5 = inlined_call_operand.hbm [shape: f32[8,8], index: 5, kind: output, shape index: {}]
  %s6 = sld [smem:[#allocation0]]
  $region30: #{mlp_forward.1} parent=0
    _
  %s8 = ssub.s32 1, %s6
  %s9 = scalar_select 0, %s8, %s6
  $region1: #{mlp_forward.1} parent=0
    #allocation2 [shape = 'u8[4096]{0}', space=vmem, size = 0x1000, scoped, tag = 'output window, operand 0, single buffered']
    #allocation3 [shape = 's32[1]{0}', space=sflag, size = 0x4, scoped, tag = 'scoped memory for mlp_forward.1']
    %10 = vsyncpa [#allocation3], 0
    // Predicated region
    $region2: #{mlp_forward.1} parent=1 // pred_check
      _
    $region3: #{mlp_forward.1} parent=1 // pred_check_branch
      %12 = sbr.rel (0) target = $region5
    $region4: #{mlp_forward.1} parent=1 // pred_region
      _
    $region5: #{mlp_forward.1} parent=1 // pred_fallthru
      _
    // Predicated region
    $region6: #{mlp_forward.1} parent=1 // pred_check
      _
    $region7: #{mlp_forward.1} parent=1 // pred_check_branch
      %14 = sbr.rel (0) target = $region9
    $region8: #{mlp_forward.1} parent=1 // pred_region
      _
    $region9: #{mlp_forward.1} parent=1 // pred_fallthru
      _
    // Predicated region
    $region10: #{mlp_forward.1} parent=1 // pred_check
      _
    $region11: #{mlp_forward.1} parent=1 // pred_check_branch
      %16 = sbr.rel (0) target = $region13
    $region12: #{mlp_forward.1} parent=1 // pred_region
      _
    $region13: #{mlp_forward.1} parent=1 // pred_fallthru
      _
    // Predicated region
    $region14: #{mlp_forward.1} parent=1 // pred_check
      _
    $region15: #{mlp_forward.1} parent=1 // pred_check_branch
      %18 = sbr.rel (0) target = $region17
    $region16: #{mlp_forward.1} parent=1 // pred_region
      _
    $region17: #{mlp_forward.1} parent=1 // pred_fallthru
      _
    // Predicated region
    $region18: #{mlp_forward.1} parent=1 // pred_check
      _
    $region19: #{mlp_forward.1} parent=1 // pred_check_branch
      %20 = sbr.rel (0) target = $region21
    $region20: #{mlp_forward.1} parent=1 // pred_region
      _
    $region21: #{mlp_forward.1} parent=1 // pred_fallthru
      _
    %v22 = vld [vmem:[%s0] sm:$0xff]
    %v23 = vpack.c.bf16 %v22, %v22
    %v24 = vld [vmem:[%s1] sm:$0xf]
    %v25 = vld [vmem:[%s1 + $0x4] sm:$0xf]
    %v26 = vld [vmem:[%s1 + $0x8] sm:$0xf]
    %v27 = vld [vmem:[%s1 + $0xc] sm:$0xf]
    %v28 = vld [vmem:[%s2] sm:$0x1]
    %v30 = vlaneseq
    %v31 = vshrl.u32 %v30, 7
    %v32 = vsub.s32 0, %v31
    %v33 = vrot.slane %v28, %v32
    %v39 = vunpack.c.l.b16 %v24
    %v40 = vunpack.c.l.b16 %v25
    %v41 = vunpack.c.l.b16 %v26
    %v42 = vunpack.c.l.b16 %v27
    %v43 = vpack.c.b16 %v40, %v39
    %v44 = vpack.c.b16 %v42, %v41
    %vm47 = vcmask 261120
    %v49 = vsel %vm47, %v23, 0
    %51 = vmatprep.subr.bf16.mxu0 0
    %52 = vmatpush1.bf16.msra.mxu0 %v43
    %53 = vmatprep.subr.bf16.mxu0 0
    %54 = vmatpush1.bf16.msra.mxu0 %v44
    %55 = vmatprep.subr.bf16.mxu0 0
    %56 = vmatpush1.bf16.msra.mxu0 0
    %57 = vmatprep.subr.bf16.mxu0 0
    %58 = vmatpush1.bf16.msra.mxu0 0
    %59 = vmatprep.subr.bf16.mxu0 0
    %60 = vmatpush1.bf16.msra.mxu0 0
    %61 = vmatprep.subr.bf16.mxu0 0
    %62 = vmatpush1.bf16.msra.mxu0 0
    %63 = vmatprep.subr.bf16.mxu0 0
    %64 = vmatpush1.bf16.msra.mxu0 0
    %65 = vmatprep.subr.bf16.mxu0 0
    %66 = vmatpush1.bf16.msra.mxu0 0
    %67 = vmatprep.subr.bf16.mxu0 0
    %68 = vmatpush1.bf16.msra.mxu0 0
    %69 = vmatprep.subr.bf16.mxu0 0
    %70 = vmatpush1.bf16.msra.mxu0 0
    %71 = vmatprep.subr.bf16.mxu0 0
    %72 = vmatpush1.bf16.msra.mxu0 0
    %73 = vmatprep.subr.bf16.mxu0 0
    %74 = vmatpush1.bf16.msra.mxu0 0
    %75 = vmatprep.subr.bf16.mxu0 0
    %76 = vmatpush1.bf16.msra.mxu0 0
    %77 = vmatprep.subr.bf16.mxu0 0
    %78 = vmatpush1.bf16.msra.mxu0 0
    %79 = vmatprep.subr.bf16.mxu0 0
    %80 = vmatpush1.bf16.msra.mxu0 0
    %81 = vmatprep.subr.bf16.mxu0 0
    %82 = vmatpush1.bf16.msra.mxu0 0
    %83 = vmatprep.mubr.bf16.mxu0 0
    %84 = vmatmul.mubr.bf16.gmra.mrb[0].mxu0 %v49
    %v85 = vpop.f32.mrb[0].mxu0
    %v86 = vadd.f32 %v33, %v85
    %v87 = vpop.f32.mrb[0].mxu0
    %v88 = vpop.f32.mrb[0].mxu0
    %v89 = vpop.f32.mrb[0].mxu0
    %90 = vdwg.mxu0
    %v91 = vmax.f32 %v86, 0.0
    %v92 = vpack.c.bf16 %v91, %v91
    %v93 = vld [vmem:[%s3] sm:$0xf]
    %v94 = vld [vmem:[%s3 + $0x4] sm:$0xf]
    %v95 = vld [vmem:[%s3 + $0x8] sm:$0xf]
    %v96 = vld [vmem:[%s3 + $0xc] sm:$0xf]
    %v97 = vld [vmem:[%s3 + $0x10] sm:$0xf]
    %v98 = vld [vmem:[%s3 + $0x14] sm:$0xf]
    %v99 = vld [vmem:[%s3 + $0x18] sm:$0xf]
    %v100 = vld [vmem:[%s3 + $0x1c] sm:$0xf]
    %v101 = vld [vmem:[%s3 + $0x20] sm:$0xf]
    %v102 = vld [vmem:[%s3 + $0x24] sm:$0xf]
    %v103 = vld [vmem:[%s3 + $0x28] sm:$0xf]
    %v104 = vld [vmem:[%s3 + $0x2c] sm:$0xf]
    %v105 = vld [vmem:[%s3 + $0x30] sm:$0xf]
    %v106 = vld [vmem:[%s3 + $0x34] sm:$0xf]
    %v107 = vld [vmem:[%s3 + $0x38] sm:$0xf]
    %v108 = vld [vmem:[%s3 + $0x3c] sm:$0xf]
    %v109 = vld [vmem:[%s4] sm:$0x1]
    %v111 = vlaneseq
    %v112 = vshrl.u32 %v111, 7
    %v113 = vsub.s32 0, %v112
    %v114 = vrot.slane %v109, %v113
    %v132 = vunpack.c.l.b16 %v93
    %v133 = vunpack.c.l.b16 %v94
    %v134 = vunpack.c.l.b16 %v95
    %v135 = vunpack.c.l.b16 %v96
    %v136 = vunpack.c.l.b16 %v97
    %v137 = vunpack.c.l.b16 %v98
    %v138 = vunpack.c.l.b16 %v99
    %v139 = vunpack.c.l.b16 %v100
    %v140 = vunpack.c.l.b16 %v101
    %v141 = vunpack.c.l.b16 %v102
    %v142 = vunpack.c.l.b16 %v103
    %v143 = vunpack.c.l.b16 %v104
    %v144 = vunpack.c.l.b16 %v105
    %v145 = vunpack.c.l.b16 %v106
    %v146 = vunpack.c.l.b16 %v107
    %v147 = vunpack.c.l.b16 %v108
    %v148 = vpack.c.b16 %v133, %v132
    %v149 = vpack.c.b16 %v135, %v134
    %v150 = vpack.c.b16 %v137, %v136
    %v151 = vpack.c.b16 %v139, %v138
    %v152 = vpack.c.b16 %v141, %v140
    %v153 = vpack.c.b16 %v143, %v142
    %v154 = vpack.c.b16 %v145, %v144
    %v155 = vpack.c.b16 %v147, %v146
    %164 = vmatprep.subr.bf16.mxu0 0
    %165 = vmatpush1.bf16.msra.mxu0 %v148
    %166 = vmatprep.subr.bf16.mxu0 0
    %167 = vmatpush1.bf16.msra.mxu0 %v149
    %168 = vmatprep.subr.bf16.mxu0 0
    %169 = vmatpush1.bf16.msra.mxu0 %v150
    %170 = vmatprep.subr.bf16.mxu0 0
    %171 = vmatpush1.bf16.msra.mxu0 %v151
    %172 = vmatprep.subr.bf16.mxu0 0
    %173 = vmatpush1.bf16.msra.mxu0 %v152
    %174 = vmatprep.subr.bf16.mxu0 0
    %175 = vmatpush1.bf16.msra.mxu0 %v153
    %176 = vmatprep.subr.bf16.mxu0 0
    %177 = vmatpush1.bf16.msra.mxu0 %v154
    %178 = vmatprep.subr.bf16.mxu0 0
    %179 = vmatpush1.bf16.msra.mxu0 %v155
    %180 = vmatprep.subr.bf16.mxu0 0
    %181 = vmatpush1.bf16.msra.mxu0 0
    %182 = vmatprep.subr.bf16.mxu0 0
    %183 = vmatpush1.bf16.msra.mxu0 0
    %184 = vmatprep.subr.bf16.mxu0 0
    %185 = vmatpush1.bf16.msra.mxu0 0
    %186 = vmatprep.subr.bf16.mxu0 0
    %187 = vmatpush1.bf16.msra.mxu0 0
    %188 = vmatprep.subr.bf16.mxu0 0
    %189 = vmatpush1.bf16.msra.mxu0 0
    %190 = vmatprep.subr.bf16.mxu0 0
    %191 = vmatpush1.bf16.msra.mxu0 0
    %192 = vmatprep.subr.bf16.mxu0 0
    %193 = vmatpush1.bf16.msra.mxu0 0
    %194 = vmatprep.subr.bf16.mxu0 0
    %195 = vmatpush1.bf16.msra.mxu0 0
    %196 = vmatprep.mubr.bf16.mxu0 0
    %197 = vmatmul.mubr.bf16.gmra.mrb[0].mxu0 %v92
    %v198 = vpop.f32.mrb[0].mxu0
    %v199 = vadd.f32 %v114, %v198
    %v200 = vpop.f32.mrb[0].mxu0
    %v201 = vpop.f32.mrb[0].mxu0
    %v202 = vpop.f32.mrb[0].mxu0
    %203 = vdwg.mxu0
    %204 = vmax.xlane.f32.xlu0 %v199
    %v205 = vpop.xlane.xlu0 %204
    %v206 = vsub.f32 %v199, %v205
    %v207 = vmul.f32 %v206, 1.442695
    %v208 = vpow.pop %v207
    %209 = vadd.xlane.f32.xlu0 %v208
    %v210 = vpop.xlane.xlu0 %209
    %v211 = vrcp.pop %v210
    %v212 = vmul.f32 %v208, %v211
    %vm213 = vcmask 64512
    %214 = vst.msk [vmem:[#allocation2] sm:$0xff] %vm213, %v212
    // Predicated region
    $region22: #{mlp_forward.1} parent=1 // pred_check
      _
    $region23: #{mlp_forward.1} parent=1 // pred_check_branch
      %216 = sbr.rel (0) target = $region25
    $region24: #{mlp_forward.1} parent=1 // pred_region
      %s218 = ssub.s32 128, 128
      %219 = vsyncadd [#allocation3], %s218
      %s221 = sshll.u32 [#allocation2], 4
      %s222 = int_to_ptr.vmem [resolvable:$true] %s221
      %224 = dma.vmem_to_hbm [thread:$0]  %s222, 128, %s5, [#allocation3]
    $region25: #{mlp_forward.1} parent=1 // pred_fallthru
      _
    // Predicated region
    $region26: #{mlp_forward.1} parent=1 // pred_check
      _
    $region27: #{mlp_forward.1} parent=1 // pred_check_branch
      %226 = sbr.rel (0) target = $region29
    $region28: #{mlp_forward.1} parent=1 // pred_region
      %227 = dma.done [#allocation3], 128
    $region29: #{mlp_forward.1} parent=1 // pred_fallthru
      _
    %228 = vsyncpa [#allocation3], 1

</llo_original>
